<compile_context>
chip_gen: v7x
topology: tpu7x:2x2x1
jax: 0.10.0
libtpu: 0.0.40
codegen_flags: <defaults>
</compile_context>

<pallas_src>
import math

import jax
import jax.numpy as jnp
from jax.experimental import pallas as pl
from jax.experimental.pallas import tpu as pltpu


def _round_up(x, m):
    return ((x + m - 1) // m) * m


def mlp_prob_kernel(x_ref, w1_ref, b1_ref, w2_ref, b2_ref,
                    w3mu_ref, b3mu_ref, w3lv_ref, b3lv_ref,
                    eps_ref, out_ref):
    # Layer 1: Linear + tanh
    h = jnp.dot(x_ref[...], w1_ref[...], preferred_element_type=jnp.float32)
    h = jnp.tanh(h + b1_ref[...])
    # Layer 2: Linear + tanh
    h = jnp.dot(h, w2_ref[...], preferred_element_type=jnp.float32)
    h = jnp.tanh(h + b2_ref[...])
    # Output layer, column-partitioned into mu / logvar halves: two small dots
    # write lane-aligned results directly (no cross-lane out[:, :d] slice).
    mu = jnp.dot(h, w3mu_ref[...], preferred_element_type=jnp.float32) + b3mu_ref[...]
    logvar = jnp.dot(h, w3lv_ref[...], preferred_element_type=jnp.float32) + b3lv_ref[...]
    # Reparameterized sample: z = mu + eps * exp(0.5 * logvar)
    z = mu + eps_ref[...] * jnp.exp(0.5 * logvar)
    # One packed (lane-dense) output slab per tile: [z | mu | logvar].
    out_ref[...] = jnp.concatenate([z, mu, logvar], axis=-1)


def mlp_prob_forward(x, params, eps, *, block_rows=512):
    """x: [B, input_size]; params: dict of transposed weights/biases; eps: [B, out]."""
    B, in_dim = x.shape
    h1 = params["w1"].shape[1]
    h2 = params["w2"].shape[1]
    out_size = params["w3_mu"].shape[1]

    # Batch tile: at least 8 rows (sublane granularity), at most `block_rows`.
    TB = min(block_rows, _round_up(B, 8))
    B_pad = _round_up(B, TB)
    if B_pad != B:
        pad = B_pad - B
        x = jnp.pad(x, ((0, pad), (0, 0)))
        eps = jnp.pad(eps, ((0, pad), (0, 0)))
    grid = (pl.cdiv(B_pad, TB),)

    def rows(feat):  # batch-tiled operand
        return pl.BlockSpec((TB, feat), lambda i: (i, 0))

    def full(a):     # resident full-array operand (weights / biases)
        return pl.BlockSpec(a.shape, lambda i: (0, 0))

    flops = 2 * B_pad * (in_dim * h1 + h1 * h2 + 2 * h2 * out_size) + 6 * B_pad * out_size
    transcendentals = B_pad * (h1 + h2 + out_size)  # tanh, tanh, exp
    bytes_accessed = 4 * (
        B_pad * (in_dim + out_size + 3 * out_size)
        + in_dim * h1 + h1 + h1 * h2 + h2 + 2 * (h2 * out_size + out_size))

    packed = pl.pallas_call(
        mlp_prob_kernel,
        out_shape=jax.ShapeDtypeStruct((B_pad, 3 * out_size), jnp.float32),
        grid_spec=pltpu.PrefetchScalarGridSpec(
            num_scalar_prefetch=0,
            grid=grid,
            in_specs=[
                rows(in_dim),
                full(params["w1"]), full(params["b1"]),
                full(params["w2"]), full(params["b2"]),
                full(params["w3_mu"]), full(params["b3_mu"]),
                full(params["w3_lv"]), full(params["b3_lv"]),
                rows(out_size),
            ],
            out_specs=rows(3 * out_size),
        ),
        compiler_params=pltpu.CompilerParams(
            dimension_semantics=("parallel",)),
        cost_estimate=pl.CostEstimate(
            flops=flops,
            transcendentals=transcendentals,
            bytes_accessed=bytes_accessed),
    )(x, params["w1"], params["b1"], params["w2"], params["b2"],
      params["w3_mu"], params["b3_mu"], params["w3_lv"], params["b3_lv"], eps)

    z = packed[:B, :out_size]
    mu = packed[:B, out_size:2 * out_size]
    logvar = packed[:B, 2 * out_size:]
    return z, mu, logvar


def orthogonal_weight(key, out_features, in_features, gain):
    """Mimics torch.nn.init.orthogonal_(weight, gain) on a (out, in) weight."""
    init = jax.nn.initializers.orthogonal(scale=gain, column_axis=-1)
    return init(key, (out_features, in_features), jnp.float32)


def make_params(key, input_size, shape, output_size):
    """Deterministic parameter construction matching MLP_Prob.__init__."""
    dims = [input_size] + list(shape) + [output_size * 2]
    gain = math.sqrt(2.0)
    n_layers = len(dims) - 1
    keys = jax.random.split(key, 2 * n_layers)
    params = {}
    for i in range(n_layers):
        fan_in, fan_out = dims[i], dims[i + 1]
        w = orthogonal_weight(keys[2 * i], fan_out, fan_in, gain)      # (out, in)
        # PyTorch Linear default bias init: U(-1/sqrt(fan_in), 1/sqrt(fan_in))
        bound = 1.0 / math.sqrt(fan_in)
        b = jax.random.uniform(keys[2 * i + 1], (fan_out,), jnp.float32,
                               minval=-bound, maxval=bound)
        wt = jnp.asarray(w.T)            # kernel takes [in, out]
        bt = jnp.asarray(b)[None, :]     # [1, out]
        if i == n_layers - 1:
            # torch.chunk(out, 2, dim=-1): first half -> mu, second -> logvar
            params["w3_mu"] = wt[:, :output_size]
            params["w3_lv"] = wt[:, output_size:]
            params["b3_mu"] = bt[:, :output_size]
            params["b3_lv"] = bt[:, output_size:]
        else:
            params[f"w{i + 1}"] = wt
            params[f"b{i + 1}"] = bt
    return params


def reference_forward(x, params, eps):
    h = jnp.tanh(x @ params["w1"] + params["b1"])
    h = jnp.tanh(h @ params["w2"] + params["b2"])
    mu = h @ params["w3_mu"] + params["b3_mu"]
    logvar = h @ params["w3_lv"] + params["b3_lv"]
    z = mu + eps * jnp.exp(0.5 * logvar)
    return z, mu, logvar


if __name__ == "__main__":
    # Small shapes consistent with the module: shape=[32, 32], tanh activation.
    input_size = 16
    hidden_shape = [32, 32]
    output_size = 8

    root = jax.random.PRNGKey(0)
    k_param, k_x1, k_e1, k_x2, k_e2 = jax.random.split(root, 5)
    params = make_params(k_param, input_size, hidden_shape, output_size)

    # Case 1: tiny batch, single tile.
    B1 = 8
    x1 = jax.random.normal(k_x1, (B1, input_size), jnp.float32)
    eps1 = jax.random.normal(k_e1, (B1, output_size), jnp.float32)
    z1, mu1, lv1 = mlp_prob_forward(x1, params, eps1)
    jax.block_until_ready((z1, mu1, lv1))

    # Case 2: batch not a multiple of the tile -> exercises grid + pad path.
    B2 = 20
    x2 = jax.random.normal(k_x2, (B2, input_size), jnp.float32)
    eps2 = jax.random.normal(k_e2, (B2, output_size), jnp.float32)
    z2, mu2, lv2 = mlp_prob_forward(x2, params, eps2, block_rows=8)
    jax.block_until_ready((z2, mu2, lv2))

    for z, mu, lv, x, eps in [(z1, mu1, lv1, x1, eps1), (z2, mu2, lv2, x2, eps2)]:
        zr, mur, lvr = reference_forward(x, params, eps)
        assert jnp.allclose(mu, mur, atol=1e-5)
        assert jnp.allclose(lv, lvr, atol=1e-5)
        assert jnp.allclose(z, zr, atol=1e-5)

    print("KERNEL_OK")
</pallas_src>

<mosaic_0001>
module attributes {stable_mosaic.version = 11 : i64} {
  func.func @mlp_prob_kernel(%arg0: i32, %arg1: memref<8x16xf32, #tpu.memory_space<vmem>>, %arg2: memref<16x32xf32, #tpu.memory_space<vmem>>, %arg3: memref<1x32xf32, #tpu.memory_space<vmem>>, %arg4: memref<32x32xf32, #tpu.memory_space<vmem>>, %arg5: memref<1x32xf32, #tpu.memory_space<vmem>>, %arg6: memref<32x8xf32, #tpu.memory_space<vmem>>, %arg7: memref<1x8xf32, #tpu.memory_space<vmem>>, %arg8: memref<32x8xf32, #tpu.memory_space<vmem>>, %arg9: memref<1x8xf32, #tpu.memory_space<vmem>>, %arg10: memref<8x8xf32, #tpu.memory_space<vmem>>, %arg11: memref<8x24xf32, #tpu.memory_space<vmem>>) attributes {dimension_semantics = [#tpu.dimension_semantics<parallel>], iteration_bounds = array<i64: 1>, scalar_prefetch = 0 : i64, scratch_operands = 0 : i64, tpu.core_type = #tpu.core_type<tc>, window_params = [{transform_indices = @transform_0, window_bounds = array<i64: 8, 16>}, {pipeline_mode = #tpu.pipeline_mode<synchronous>, transform_indices = @transform_1, window_bounds = array<i64: 16, 32>}, {pipeline_mode = #tpu.pipeline_mode<synchronous>, transform_indices = @transform_2, window_bounds = array<i64: 1, 32>}, {pipeline_mode = #tpu.pipeline_mode<synchronous>, transform_indices = @transform_3, window_bounds = array<i64: 32, 32>}, {pipeline_mode = #tpu.pipeline_mode<synchronous>, transform_indices = @transform_4, window_bounds = array<i64: 1, 32>}, {pipeline_mode = #tpu.pipeline_mode<synchronous>, transform_indices = @transform_5, window_bounds = array<i64: 32, 8>}, {pipeline_mode = #tpu.pipeline_mode<synchronous>, transform_indices = @transform_6, window_bounds = array<i64: 1, 8>}, {pipeline_mode = #tpu.pipeline_mode<synchronous>, transform_indices = @transform_7, window_bounds = array<i64: 32, 8>}, {pipeline_mode = #tpu.pipeline_mode<synchronous>, transform_indices = @transform_8, window_bounds = array<i64: 1, 8>}, {transform_indices = @transform_9, window_bounds = array<i64: 8, 8>}, {transform_indices = @transform_10, window_bounds = array<i64: 8, 24>}]} {
    %c0 = arith.constant 0 : index
    %c0_0 = arith.constant 0 : index
    %0 = vector.load %arg1[%c0, %c0_0] : memref<8x16xf32, #tpu.memory_space<vmem>>, vector<8x16xf32>
    %c0_1 = arith.constant 0 : index
    %c0_2 = arith.constant 0 : index
    %1 = vector.load %arg2[%c0_1, %c0_2] : memref<16x32xf32, #tpu.memory_space<vmem>>, vector<16x32xf32>
    %cst = arith.constant dense<0.000000e+00> : vector<8x32xf32>
    %2 = tpu.matmul %0, %1, %cst {dimension_numbers = #tpu.dot_dimension_numbers<[1], [0], [0], [1], [0, 0, 1, 1], [], []>} : vector<8x16xf32>, vector<16x32xf32>, vector<8x32xf32> -> vector<8x32xf32>
    %c0_3 = arith.constant 0 : index
    %c0_4 = arith.constant 0 : index
    %3 = vector.load %arg3[%c0_3, %c0_4] : memref<1x32xf32, #tpu.memory_space<vmem>>, vector<1x32xf32>
    %4 = vector.broadcast %3 : vector<1x32xf32> to vector<8x32xf32>
    %5 = arith.addf %2, %4 : vector<8x32xf32>
    %6 = math.tanh %5 : vector<8x32xf32>
    %c0_5 = arith.constant 0 : index
    %c0_6 = arith.constant 0 : index
    %7 = vector.load %arg4[%c0_5, %c0_6] : memref<32x32xf32, #tpu.memory_space<vmem>>, vector<32x32xf32>
    %cst_7 = arith.constant dense<0.000000e+00> : vector<8x32xf32>
    %8 = tpu.matmul %6, %7, %cst_7 {dimension_numbers = #tpu.dot_dimension_numbers<[1], [0], [0], [1], [0, 0, 1, 1], [], []>} : vector<8x32xf32>, vector<32x32xf32>, vector<8x32xf32> -> vector<8x32xf32>
    %c0_8 = arith.constant 0 : index
    %c0_9 = arith.constant 0 : index
    %9 = vector.load %arg5[%c0_8, %c0_9] : memref<1x32xf32, #tpu.memory_space<vmem>>, vector<1x32xf32>
    %10 = vector.broadcast %9 : vector<1x32xf32> to vector<8x32xf32>
    %11 = arith.addf %8, %10 : vector<8x32xf32>
    %12 = math.tanh %11 : vector<8x32xf32>
    %c0_10 = arith.constant 0 : index
    %c0_11 = arith.constant 0 : index
    %13 = vector.load %arg6[%c0_10, %c0_11] : memref<32x8xf32, #tpu.memory_space<vmem>>, vector<32x8xf32>
    %cst_12 = arith.constant dense<0.000000e+00> : vector<8x8xf32>
    %14 = tpu.matmul %12, %13, %cst_12 {dimension_numbers = #tpu.dot_dimension_numbers<[1], [0], [0], [1], [0, 0, 1, 1], [], []>} : vector<8x32xf32>, vector<32x8xf32>, vector<8x8xf32> -> vector<8x8xf32>
    %c0_13 = arith.constant 0 : index
    %c0_14 = arith.constant 0 : index
    %15 = vector.load %arg7[%c0_13, %c0_14] : memref<1x8xf32, #tpu.memory_space<vmem>>, vector<1x8xf32>
    %16 = vector.broadcast %15 : vector<1x8xf32> to vector<8x8xf32>
    %17 = arith.addf %14, %16 : vector<8x8xf32>
    %c0_15 = arith.constant 0 : index
    %c0_16 = arith.constant 0 : index
    %18 = vector.load %arg8[%c0_15, %c0_16] : memref<32x8xf32, #tpu.memory_space<vmem>>, vector<32x8xf32>
    %cst_17 = arith.constant dense<0.000000e+00> : vector<8x8xf32>
    %19 = tpu.matmul %12, %18, %cst_17 {dimension_numbers = #tpu.dot_dimension_numbers<[1], [0], [0], [1], [0, 0, 1, 1], [], []>} : vector<8x32xf32>, vector<32x8xf32>, vector<8x8xf32> -> vector<8x8xf32>
    %c0_18 = arith.constant 0 : index
    %c0_19 = arith.constant 0 : index
    %20 = vector.load %arg9[%c0_18, %c0_19] : memref<1x8xf32, #tpu.memory_space<vmem>>, vector<1x8xf32>
    %21 = vector.broadcast %20 : vector<1x8xf32> to vector<8x8xf32>
    %22 = arith.addf %19, %21 : vector<8x8xf32>
    %c0_20 = arith.constant 0 : index
    %c0_21 = arith.constant 0 : index
    %23 = vector.load %arg10[%c0_20, %c0_21] : memref<8x8xf32, #tpu.memory_space<vmem>>, vector<8x8xf32>
    %cst_22 = arith.constant 5.000000e-01 : f32
    %24 = vector.broadcast %cst_22 : f32 to vector<8x8xf32>
    %25 = arith.mulf %24, %22 : vector<8x8xf32>
    %26 = math.exp %25 : vector<8x8xf32>
    %27 = arith.mulf %23, %26 : vector<8x8xf32>
    %28 = arith.addf %17, %27 : vector<8x8xf32>
    %29 = tpu.concatenate %28, %17, %22 in 1 : vector<8x8xf32>, vector<8x8xf32>, vector<8x8xf32> -> vector<8x24xf32>
    %c0_23 = arith.constant 0 : index
    %c0_24 = arith.constant 0 : index
    %30 = vector.load %arg11[%c0_23, %c0_24] : memref<8x24xf32, #tpu.memory_space<vmem>>, vector<8x24xf32>
    tpu.vector_store %arg11[%c0_23, %c0_24], %29 {strides = array<i32>} : memref<8x24xf32, #tpu.memory_space<vmem>>, vector<8x24xf32>,
    return
  }
  func.func @transform_0(%arg0: i32) -> (i32, i32) {
    %c0_i32 = arith.constant 0 : i32
    %c0_i32_0 = arith.constant 0 : i32
    return %arg0, %c0_i32 : i32, i32
  }
  func.func @transform_1(%arg0: i32) -> (i32, i32) {
    %c0_i32 = arith.constant 0 : i32
    %c0_i32_0 = arith.constant 0 : i32
    %c0_i32_1 = arith.constant 0 : i32
    return %c0_i32, %c0_i32_0 : i32, i32
  }
  func.func @transform_2(%arg0: i32) -> (i32, i32) {
    %c0_i32 = arith.constant 0 : i32
    %c0_i32_0 = arith.constant 0 : i32
    %c0_i32_1 = arith.constant 0 : i32
    return %c0_i32, %c0_i32_0 : i32, i32
  }
  func.func @transform_3(%arg0: i32) -> (i32, i32) {
    %c0_i32 = arith.constant 0 : i32
    %c0_i32_0 = arith.constant 0 : i32
    %c0_i32_1 = arith.constant 0 : i32
    return %c0_i32, %c0_i32_0 : i32, i32
  }
  func.func @transform_4(%arg0: i32) -> (i32, i32) {
    %c0_i32 = arith.constant 0 : i32
    %c0_i32_0 = arith.constant 0 : i32
    %c0_i32_1 = arith.constant 0 : i32
    return %c0_i32, %c0_i32_0 : i32, i32
  }
  func.func @transform_5(%arg0: i32) -> (i32, i32) {
    %c0_i32 = arith.constant 0 : i32
    %c0_i32_0 = arith.constant 0 : i32
    %c0_i32_1 = arith.constant 0 : i32
    return %c0_i32, %c0_i32_0 : i32, i32
  }
  func.func @transform_6(%arg0: i32) -> (i32, i32) {
    %c0_i32 = arith.constant 0 : i32
    %c0_i32_0 = arith.constant 0 : i32
    %c0_i32_1 = arith.constant 0 : i32
    return %c0_i32, %c0_i32_0 : i32, i32
  }
  func.func @transform_7(%arg0: i32) -> (i32, i32) {
    %c0_i32 = arith.constant 0 : i32
    %c0_i32_0 = arith.constant 0 : i32
    %c0_i32_1 = arith.constant 0 : i32
    return %c0_i32, %c0_i32_0 : i32, i32
  }
  func.func @transform_8(%arg0: i32) -> (i32, i32) {
    %c0_i32 = arith.constant 0 : i32
    %c0_i32_0 = arith.constant 0 : i32
    %c0_i32_1 = arith.constant 0 : i32
    return %c0_i32, %c0_i32_0 : i32, i32
  }
  func.func @transform_9(%arg0: i32) -> (i32, i32) {
    %c0_i32 = arith.constant 0 : i32
    %c0_i32_0 = arith.constant 0 : i32
    return %arg0, %c0_i32 : i32, i32
  }
  func.func @transform_10(%arg0: i32) -> (i32, i32) {
    %c0_i32 = arith.constant 0 : i32
    %c0_i32_0 = arith.constant 0 : i32
    return %arg0, %c0_i32 : i32, i32
  }
}

</mosaic_0001>

<llo_original>
// kernel: tpu_custom_call.1
$region0: #{tpu_custom_call.1}
  #allocation0 [shape = 'u32[]', space=smem, size = 0x4, offset = 0x4, fixed_abs, tag = 'smem constant byte address 0x4 - core index']
  #allocation1 [shape = 'u32[144,128]{1,0:T(1,128)}', space=vmem, size = 0x12000, scoped, tag = 'internal scratch']
  %s0 = inlined_call_operand.vmem [shape: f32[8,16], index: 0, kind: input, shape index: {}]
  %s1 = inlined_call_operand.vmem [shape: f32[16,32], index: 1, kind: input, shape index: {}]
  %s2 = inlined_call_operand.vmem [shape: f32[1,32], index: 2, kind: input, shape index: {}]
  %s3 = inlined_call_operand.vmem [shape: f32[32,32], index: 3, kind: input, shape index: {}]
  %s4 = inlined_call_operand.vmem [shape: f32[1,32], index: 4, kind: input, shape index: {}]
  %s5 = inlined_call_operand.vmem [shape: f32[32,8], index: 5, kind: input, shape index: {}]
  %s6 = inlined_call_operand.vmem [shape: f32[1,8], index: 6, kind: input, shape index: {}]
  %s7 = inlined_call_operand.vmem [shape: f32[32,8], index: 7, kind: input, shape index: {}]
  %s8 = inlined_call_operand.vmem [shape: f32[1,8], index: 8, kind: input, shape index: {}]
  %s9 = inlined_call_operand.vmem [shape: f32[8,8], index: 9, kind: input, shape index: {}]
  %s10 = inlined_call_operand.hbm [shape: f32[8,24], index: 10, kind: output, shape index: {}]
  %s11 = sld [smem:[#allocation0]]
  $region50: #{tpu_custom_call.1} parent=0
    _
  %s13 = ssub.s32 1, %s11
  %s14 = scalar_select 0, %s13, %s11
  $region1: #{tpu_custom_call.1} parent=0
    #allocation2 [shape = 'u8[4096]{0}', space=vmem, size = 0x1000, scoped, tag = 'output window, operand 0, single buffered']
    #allocation3 [shape = 's32[1]{0}', space=sflag, size = 0x4, scoped, tag = 'scoped memory for tpu_custom_call.1']
    %15 = vsyncpa [#allocation3], 0
    // Predicated region
    $region2: #{tpu_custom_call.1} parent=1 // pred_check
      _
    $region3: #{tpu_custom_call.1} parent=1 // pred_check_branch
      %17 = sbr.rel (0) target = $region5
    $region4: #{tpu_custom_call.1} parent=1 // pred_region
      _
    $region5: #{tpu_custom_call.1} parent=1 // pred_fallthru
      _
    // Predicated region
    $region6: #{tpu_custom_call.1} parent=1 // pred_check
      _
    $region7: #{tpu_custom_call.1} parent=1 // pred_check_branch
      %19 = sbr.rel (0) target = $region9
    $region8: #{tpu_custom_call.1} parent=1 // pred_region
      _
    $region9: #{tpu_custom_call.1} parent=1 // pred_fallthru
      _
    // Predicated region
    $region10: #{tpu_custom_call.1} parent=1 // pred_check
      _
    $region11: #{tpu_custom_call.1} parent=1 // pred_check_branch
      %21 = sbr.rel (0) target = $region13
    $region12: #{tpu_custom_call.1} parent=1 // pred_region
      _
    $region13: #{tpu_custom_call.1} parent=1 // pred_fallthru
      _
    // Predicated region
    $region14: #{tpu_custom_call.1} parent=1 // pred_check
      _
    $region15: #{tpu_custom_call.1} parent=1 // pred_check_branch
      %23 = sbr.rel (0) target = $region17
    $region16: #{tpu_custom_call.1} parent=1 // pred_region
      _
    $region17: #{tpu_custom_call.1} parent=1 // pred_fallthru
      _
    // Predicated region
    $region18: #{tpu_custom_call.1} parent=1 // pred_check
      _
    $region19: #{tpu_custom_call.1} parent=1 // pred_check_branch
      %25 = sbr.rel (0) target = $region21
    $region20: #{tpu_custom_call.1} parent=1 // pred_region
      _
    $region21: #{tpu_custom_call.1} parent=1 // pred_fallthru
      _
    // Predicated region
    $region22: #{tpu_custom_call.1} parent=1 // pred_check
      _
    $region23: #{tpu_custom_call.1} parent=1 // pred_check_branch
      %27 = sbr.rel (0) target = $region25
    $region24: #{tpu_custom_call.1} parent=1 // pred_region
      _
    $region25: #{tpu_custom_call.1} parent=1 // pred_fallthru
      _
    // Predicated region
    $region26: #{tpu_custom_call.1} parent=1 // pred_check
      _
    $region27: #{tpu_custom_call.1} parent=1 // pred_check_branch
      %29 = sbr.rel (0) target = $region29
    $region28: #{tpu_custom_call.1} parent=1 // pred_region
      _
    $region29: #{tpu_custom_call.1} parent=1 // pred_fallthru
      _
    // Predicated region
    $region30: #{tpu_custom_call.1} parent=1 // pred_check
      _
    $region31: #{tpu_custom_call.1} parent=1 // pred_check_branch
      %31 = sbr.rel (0) target = $region33
    $region32: #{tpu_custom_call.1} parent=1 // pred_region
      _
    $region33: #{tpu_custom_call.1} parent=1 // pred_fallthru
      _
    // Predicated region
    $region34: #{tpu_custom_call.1} parent=1 // pred_check
      _
    $region35: #{tpu_custom_call.1} parent=1 // pred_check_branch
      %33 = sbr.rel (0) target = $region37
    $region36: #{tpu_custom_call.1} parent=1 // pred_region
      _
    $region37: #{tpu_custom_call.1} parent=1 // pred_fallthru
      _
    // Predicated region
    $region38: #{tpu_custom_call.1} parent=1 // pred_check
      _
    $region39: #{tpu_custom_call.1} parent=1 // pred_check_branch
      %35 = sbr.rel (0) target = $region41
    $region40: #{tpu_custom_call.1} parent=1 // pred_region
      _
    $region41: #{tpu_custom_call.1} parent=1 // pred_fallthru
      _
    %v36 = vld [vmem:[%s0] sm:$0xff]
    %v37 = vld [vmem:[%s1] sm:$0xff]
    %v38 = vld [vmem:[%s1 + $0x8] sm:$0xff]
    %v39 = vld [vmem:[%s2] sm:$0x1]
    %v41 = vlaneseq
    %v42 = vshrl.u32 %v41, 7
    %v43 = vsub.s32 0, %v42
    %v44 = vrot.slane %v39, %v43
    %vm46 = vcmask 130048
    %v48 = vsel %vm46, %v36, 0
    %50 = vmatprep.subr.mxu0 0.0
    %51 = vmatpush1.msra.mxu0 %v37
    %52 = vmatprep.subr.mxu0 0.0
    %53 = vmatpush1.msra.mxu0 %v38
    %54 = vmatprep.subr.mxu0 0.0
    %55 = vmatpush1.msra.mxu0 0.0
    %56 = vmatprep.subr.mxu0 0.0
    %57 = vmatpush1.msra.mxu0 0.0
    %58 = vmatprep.subr.mxu0 0.0
    %59 = vmatpush1.msra.mxu0 0.0
    %60 = vmatprep.subr.mxu0 0.0
    %61 = vmatpush1.msra.mxu0 0.0
    %62 = vmatprep.subr.mxu0 0.0
    %63 = vmatpush1.msra.mxu0 0.0
    %64 = vmatprep.subr.mxu0 0.0
    %65 = vmatpush1.msra.mxu0 0.0
    %66 = vmatprep.subr.mxu0 0.0
    %67 = vmatpush1.msra.mxu0 0.0
    %68 = vmatprep.subr.mxu0 0.0
    %69 = vmatpush1.msra.mxu0 0.0
    %70 = vmatprep.subr.mxu0 0.0
    %71 = vmatpush1.msra.mxu0 0.0
    %72 = vmatprep.subr.mxu0 0.0
    %73 = vmatpush1.msra.mxu0 0.0
    %74 = vmatprep.subr.mxu0 0.0
    %75 = vmatpush1.msra.mxu0 0.0
    %76 = vmatprep.subr.mxu0 0.0
    %77 = vmatpush1.msra.mxu0 0.0
    %78 = vmatprep.subr.mxu0 0.0
    %79 = vmatpush1.msra.mxu0 0.0
    %80 = vmatprep.subr.mxu0 0.0
    %81 = vmatpush1.msra.mxu0 0.0
    %82 = vmatprep.subr.mxu0 0.0
    %83 = vmatpush1.msra.mxu0 0.0
    %84 = vmatprep.subr.mxu0 0.0
    %85 = vmatpush1.msra.mxu0 0.0
    %86 = vmatprep.subr.mxu0 0.0
    %87 = vmatpush1.msra.mxu0 0.0
    %88 = vmatprep.subr.mxu0 0.0
    %89 = vmatpush1.msra.mxu0 0.0
    %90 = vmatprep.subr.mxu0 0.0
    %91 = vmatpush1.msra.mxu0 0.0
    %92 = vmatprep.subr.mxu0 0.0
    %93 = vmatpush1.msra.mxu0 0.0
    %94 = vmatprep.subr.mxu0 0.0
    %95 = vmatpush1.msra.mxu0 0.0
    %96 = vmatprep.subr.mxu0 0.0
    %97 = vmatpush1.msra.mxu0 0.0
    %98 = vmatprep.subr.mxu0 0.0
    %99 = vmatpush1.msra.mxu0 0.0
    %100 = vmatprep.subr.mxu0 0.0
    %101 = vmatpush1.msra.mxu0 0.0
    %102 = vmatprep.subr.mxu0 0.0
    %103 = vmatpush1.msra.mxu0 0.0
    %104 = vmatprep.subr.mxu0 0.0
    %105 = vmatpush1.msra.mxu0 0.0
    %106 = vmatprep.subr.mxu0 0.0
    %107 = vmatpush1.msra.mxu0 0.0
    %108 = vmatprep.subr.mxu0 0.0
    %109 = vmatpush1.msra.mxu0 0.0
    %110 = vmatprep.subr.mxu0 0.0
    %111 = vmatpush1.msra.mxu0 0.0
    %112 = vmatprep.subr.mxu0 0.0
    %113 = vmatpush1.msra.mxu0 0.0
    %114 = vmatprep.mubr.f32.mxu0 0.0
    %115 = vmatmul.mubr.f32.gmra.mrb[0].mxu0 %v48
    %v116 = vpop.f32.mrb[0].mxu0
    %v117 = vadd.f32 %v44, %v116
    %v118 = vpop.f32.mrb[0].mxu0
    %119 = vdwg.mxu0
    %v120 = vtanh.pop %v117
    %v121 = vld [vmem:[%s3] sm:$0xff]
    %v122 = vld [vmem:[%s3 + $0x8] sm:$0xff]
    %v123 = vld [vmem:[%s3 + $0x10] sm:$0xff]
    %v124 = vld [vmem:[%s3 + $0x18] sm:$0xff]
    %v125 = vld [vmem:[%s4] sm:$0x1]
    %v127 = vlaneseq
    %v128 = vshrl.u32 %v127, 7
    %v129 = vsub.s32 0, %v128
    %v130 = vrot.slane %v125, %v129
    %vm132 = vcmask 261120
    %v134 = vsel %vm132, %v120, 0
    %136 = vmatprep.subr.mxu0 0.0
    %137 = vmatpush1.msra.mxu0 %v121
    %138 = vmatprep.subr.mxu0 0.0
    %139 = vmatpush1.msra.mxu0 %v122
    %140 = vmatprep.subr.mxu0 0.0
    %141 = vmatpush1.msra.mxu0 %v123
    %142 = vmatprep.subr.mxu0 0.0
    %143 = vmatpush1.msra.mxu0 %v124
    %144 = vmatprep.subr.mxu0 0.0
    %145 = vmatpush1.msra.mxu0 0.0
    %146 = vmatprep.subr.mxu0 0.0
    %147 = vmatpush1.msra.mxu0 0.0
    %148 = vmatprep.subr.mxu0 0.0
    %149 = vmatpush1.msra.mxu0 0.0
    %150 = vmatprep.subr.mxu0 0.0
    %151 = vmatpush1.msra.mxu0 0.0
    %152 = vmatprep.subr.mxu0 0.0
    %153 = vmatpush1.msra.mxu0 0.0
    %154 = vmatprep.subr.mxu0 0.0
    %155 = vmatpush1.msra.mxu0 0.0
    %156 = vmatprep.subr.mxu0 0.0
    %157 = vmatpush1.msra.mxu0 0.0
    %158 = vmatprep.subr.mxu0 0.0
    %159 = vmatpush1.msra.mxu0 0.0
    %160 = vmatprep.subr.mxu0 0.0
    %161 = vmatpush1.msra.mxu0 0.0
    %162 = vmatprep.subr.mxu0 0.0
    %163 = vmatpush1.msra.mxu0 0.0
    %164 = vmatprep.subr.mxu0 0.0
    %165 = vmatpush1.msra.mxu0 0.0
    %166 = vmatprep.subr.mxu0 0.0
    %167 = vmatpush1.msra.mxu0 0.0
    %168 = vmatprep.subr.mxu0 0.0
    %169 = vmatpush1.msra.mxu0 0.0
    %170 = vmatprep.subr.mxu0 0.0
    %171 = vmatpush1.msra.mxu0 0.0
    %172 = vmatprep.subr.mxu0 0.0
    %173 = vmatpush1.msra.mxu0 0.0
    %174 = vmatprep.subr.mxu0 0.0
    %175 = vmatpush1.msra.mxu0 0.0
    %176 = vmatprep.subr.mxu0 0.0
    %177 = vmatpush1.msra.mxu0 0.0
    %178 = vmatprep.subr.mxu0 0.0
    %179 = vmatpush1.msra.mxu0 0.0
    %180 = vmatprep.subr.mxu0 0.0
    %181 = vmatpush1.msra.mxu0 0.0
    %182 = vmatprep.subr.mxu0 0.0
    %183 = vmatpush1.msra.mxu0 0.0
    %184 = vmatprep.subr.mxu0 0.0
    %185 = vmatpush1.msra.mxu0 0.0
    %186 = vmatprep.subr.mxu0 0.0
    %187 = vmatpush1.msra.mxu0 0.0
    %188 = vmatprep.subr.mxu0 0.0
    %189 = vmatpush1.msra.mxu0 0.0
    %190 = vmatprep.subr.mxu0 0.0
    %191 = vmatpush1.msra.mxu0 0.0
    %192 = vmatprep.subr.mxu0 0.0
    %193 = vmatpush1.msra.mxu0 0.0
    %194 = vmatprep.subr.mxu0 0.0
    %195 = vmatpush1.msra.mxu0 0.0
    %196 = vmatprep.subr.mxu0 0.0
    %197 = vmatpush1.msra.mxu0 0.0
    %198 = vmatprep.subr.mxu0 0.0
    %199 = vmatpush1.msra.mxu0 0.0
    %200 = vmatprep.mubr.f32.mxu0 0.0
    %201 = vmatmul.mubr.f32.gmra.mrb[0].mxu0 %v134
    %v202 = vpop.f32.mrb[0].mxu0
    %v203 = vadd.f32 %v130, %v202
    %v204 = vpop.f32.mrb[0].mxu0
    %205 = vdwg.mxu0
    %v206 = vtanh.pop %v203
    %v207 = vld [vmem:[%s5] sm:$0xff]
    %v208 = vld [vmem:[%s5 + $0x8] sm:$0xff]
    %v209 = vld [vmem:[%s5 + $0x10] sm:$0xff]
    %v210 = vld [vmem:[%s5 + $0x18] sm:$0xff]
    %v211 = vld [vmem:[%s6] sm:$0x1]
    %v213 = vlaneseq
    %v214 = vshrl.u32 %v213, 7
    %v215 = vsub.s32 0, %v214
    %v216 = vrot.slane %v211, %v215
    %v219 = vsel %vm132, %v206, 0
    %221 = vmatprep.subr.mxu0 0.0
    %222 = vmatpush1.msra.mxu0 %v207
    %223 = vmatprep.subr.mxu0 0.0
    %224 = vmatpush1.msra.mxu0 %v208
    %225 = vmatprep.subr.mxu0 0.0
    %226 = vmatpush1.msra.mxu0 %v209
    %227 = vmatprep.subr.mxu0 0.0
    %228 = vmatpush1.msra.mxu0 %v210
    %229 = vmatprep.subr.mxu0 0.0
    %230 = vmatpush1.msra.mxu0 0.0
    %231 = vmatprep.subr.mxu0 0.0
    %232 = vmatpush1.msra.mxu0 0.0
    %233 = vmatprep.subr.mxu0 0.0
    %234 = vmatpush1.msra.mxu0 0.0
    %235 = vmatprep.subr.mxu0 0.0
    %236 = vmatpush1.msra.mxu0 0.0
    %237 = vmatprep.subr.mxu0 0.0
    %238 = vmatpush1.msra.mxu0 0.0
    %239 = vmatprep.subr.mxu0 0.0
    %240 = vmatpush1.msra.mxu0 0.0
    %241 = vmatprep.subr.mxu0 0.0
    %242 = vmatpush1.msra.mxu0 0.0
    %243 = vmatprep.subr.mxu0 0.0
    %244 = vmatpush1.msra.mxu0 0.0
    %245 = vmatprep.subr.mxu0 0.0
    %246 = vmatpush1.msra.mxu0 0.0
    %247 = vmatprep.subr.mxu0 0.0
    %248 = vmatpush1.msra.mxu0 0.0
    %249 = vmatprep.subr.mxu0 0.0
    %250 = vmatpush1.msra.mxu0 0.0
    %251 = vmatprep.subr.mxu0 0.0
    %252 = vmatpush1.msra.mxu0 0.0
    %253 = vmatprep.subr.mxu0 0.0
    %254 = vmatpush1.msra.mxu0 0.0
    %255 = vmatprep.subr.mxu0 0.0
    %256 = vmatpush1.msra.mxu0 0.0
    %257 = vmatprep.subr.mxu0 0.0
    %258 = vmatpush1.msra.mxu0 0.0
    %259 = vmatprep.subr.mxu0 0.0
    %260 = vmatpush1.msra.mxu0 0.0
    %261 = vmatprep.subr.mxu0 0.0
    %262 = vmatpush1.msra.mxu0 0.0
    %263 = vmatprep.subr.mxu0 0.0
    %264 = vmatpush1.msra.mxu0 0.0
    %265 = vmatprep.subr.mxu0 0.0
    %266 = vmatpush1.msra.mxu0 0.0
    %267 = vmatprep.subr.mxu0 0.0
    %268 = vmatpush1.msra.mxu0 0.0
    %269 = vmatprep.subr.mxu0 0.0
    %270 = vmatpush1.msra.mxu0 0.0
    %271 = vmatprep.subr.mxu0 0.0
    %272 = vmatpush1.msra.mxu0 0.0
    %273 = vmatprep.subr.mxu0 0.0
    %274 = vmatpush1.msra.mxu0 0.0
    %275 = vmatprep.subr.mxu0 0.0
    %276 = vmatpush1.msra.mxu0 0.0
    %277 = vmatprep.subr.mxu0 0.0
    %278 = vmatpush1.msra.mxu0 0.0
    %279 = vmatprep.subr.mxu0 0.0
    %280 = vmatpush1.msra.mxu0 0.0
    %281 = vmatprep.subr.mxu0 0.0
    %282 = vmatpush1.msra.mxu0 0.0
    %283 = vmatprep.subr.mxu0 0.0
    %284 = vmatpush1.msra.mxu0 0.0
    %285 = vmatprep.mubr.f32.mxu0 0.0
    %286 = vmatmul.mubr.f32.gmra.mrb[0].mxu0 %v219
    %v287 = vpop.f32.mrb[0].mxu0
    %v288 = vadd.f32 %v216, %v287
    %v289 = vpop.f32.mrb[0].mxu0
    %290 = vdwg.mxu0
    %v291 = vld [vmem:[%s7] sm:$0xff]
    %v292 = vld [vmem:[%s7 + $0x8] sm:$0xff]
    %v293 = vld [vmem:[%s7 + $0x10] sm:$0xff]
    %v294 = vld [vmem:[%s7 + $0x18] sm:$0xff]
    %v295 = vld [vmem:[%s8] sm:$0x1]
    %v297 = vlaneseq
    %v298 = vshrl.u32 %v297, 7
    %v299 = vsub.s32 0, %v298
    %v300 = vrot.slane %v295, %v299
    %302 = vmatprep.subr.mxu0 0.0
    %303 = vmatpush1.msra.mxu0 %v291
    %304 = vmatprep.subr.mxu0 0.0
    %305 = vmatpush1.msra.mxu0 %v292
    %306 = vmatprep.subr.mxu0 0.0
    %307 = vmatpush1.msra.mxu0 %v293
    %308 = vmatprep.subr.mxu0 0.0
    %309 = vmatpush1.msra.mxu0 %v294
    %310 = vmatprep.subr.mxu0 0.0
    %311 = vmatpush1.msra.mxu0 0.0
    %312 = vmatprep.subr.mxu0 0.0
    %313 = vmatpush1.msra.mxu0 0.0
    %314 = vmatprep.subr.mxu0 0.0
    %315 = vmatpush1.msra.mxu0 0.0
    %316 = vmatprep.subr.mxu0 0.0
    %317 = vmatpush1.msra.mxu0 0.0
    %318 = vmatprep.subr.mxu0 0.0
    %319 = vmatpush1.msra.mxu0 0.0
    %320 = vmatprep.subr.mxu0 0.0
    %321 = vmatpush1.msra.mxu0 0.0
    %322 = vmatprep.subr.mxu0 0.0
    %323 = vmatpush1.msra.mxu0 0.0
    %324 = vmatprep.subr.mxu0 0.0
    %325 = vmatpush1.msra.mxu0 0.0
    %326 = vmatprep.subr.mxu0 0.0
    %327 = vmatpush1.msra.mxu0 0.0
    %328 = vmatprep.subr.mxu0 0.0
    %329 = vmatpush1.msra.mxu0 0.0
    %330 = vmatprep.subr.mxu0 0.0
    %331 = vmatpush1.msra.mxu0 0.0
    %332 = vmatprep.subr.mxu0 0.0
    %333 = vmatpush1.msra.mxu0 0.0
    %334 = vmatprep.subr.mxu0 0.0
    %335 = vmatpush1.msra.mxu0 0.0
    %336 = vmatprep.subr.mxu0 0.0
    %337 = vmatpush1.msra.mxu0 0.0
    %338 = vmatprep.subr.mxu0 0.0
    %339 = vmatpush1.msra.mxu0 0.0
    %340 = vmatprep.subr.mxu0 0.0
    %341 = vmatpush1.msra.mxu0 0.0
    %342 = vmatprep.subr.mxu0 0.0
    %343 = vmatpush1.msra.mxu0 0.0
    %344 = vmatprep.subr.mxu0 0.0
    %345 = vmatpush1.msra.mxu0 0.0
    %346 = vmatprep.subr.mxu0 0.0
    %347 = vmatpush1.msra.mxu0 0.0
    %348 = vmatprep.subr.mxu0 0.0
    %349 = vmatpush1.msra.mxu0 0.0
    %350 = vmatprep.subr.mxu0 0.0
    %351 = vmatpush1.msra.mxu0 0.0
    %352 = vmatprep.subr.mxu0 0.0
    %353 = vmatpush1.msra.mxu0 0.0
    %354 = vmatprep.subr.mxu0 0.0
    %355 = vmatpush1.msra.mxu0 0.0
    %356 = vmatprep.subr.mxu0 0.0
    %357 = vmatpush1.msra.mxu0 0.0
    %358 = vmatprep.subr.mxu0 0.0
    %359 = vmatpush1.msra.mxu0 0.0
    %360 = vmatprep.subr.mxu0 0.0
    %361 = vmatpush1.msra.mxu0 0.0
    %362 = vmatprep.subr.mxu0 0.0
    %363 = vmatpush1.msra.mxu0 0.0
    %364 = vmatprep.subr.mxu0 0.0
    %365 = vmatpush1.msra.mxu0 0.0
    %366 = vmatprep.mubr.f32.mxu0 0.0
    %367 = vmatmul.mubr.f32.gmra.mrb[0].mxu0 %v219
    %v368 = vpop.f32.mrb[0].mxu0
    %v369 = vadd.f32 %v300, %v368
    %v370 = vpop.f32.mrb[0].mxu0
    %371 = vdwg.mxu0
    %v372 = vld [vmem:[%s9] sm:$0xff]
    %v373 = vmul.f32 %v369, 0.5
    %v374 = vmul.f32 %v373, 1.442695
    %v375 = vpow.pop %v374
    %v376 = vmul.f32 %v372, %v375
    %v377 = vadd.f32 %v288, %v376
    %379 = vrot.lane.b32.xlu0 %v288, 8
    %v380 = vpop.permute.xlu0 %379
    %383 = vrot.lane.b32.xlu0 %v369, 16
    %v384 = vpop.permute.xlu0 %383
    %vm386 = vcmask 64512
    %v387 = vsel %vm386, %v377, %v380
    %v388 = vsel %vm46, %v387, %v384
    %vm389 = vcmask 195584
    %390 = vst.msk [vmem:[#allocation2] sm:$0xff] %vm389, %v388
    // Predicated region
    $region42: #{tpu_custom_call.1} parent=1 // pred_check
      _
    $region43: #{tpu_custom_call.1} parent=1 // pred_check_branch
      %392 = sbr.rel (0) target = $region45
    $region44: #{tpu_custom_call.1} parent=1 // pred_region
      %s394 = ssub.s32 128, 128
      %395 = vsyncadd [#allocation3], %s394
      %s397 = sshll.u32 [#allocation2], 4
      %s398 = int_to_ptr.vmem [resolvable:$true] %s397
      %400 = dma.vmem_to_hbm [thread:$0]  %s398, 128, %s10, [#allocation3]
    $region45: #{tpu_custom_call.1} parent=1 // pred_fallthru
      _
    // Predicated region
    $region46: #{tpu_custom_call.1} parent=1 // pred_check
      _
    $region47: #{tpu_custom_call.1} parent=1 // pred_check_branch
      %402 = sbr.rel (0) target = $region49
    $region48: #{tpu_custom_call.1} parent=1 // pred_region
      %403 = dma.done [#allocation3], 128
    $region49: #{tpu_custom_call.1} parent=1 // pred_fallthru
      _
    %404 = vsyncpa [#allocation3], 1

</llo_original>
